<compile_context>
chip_gen: v7x
topology: tpu7x:2x2x1
jax: 0.10.0
libtpu: 0.0.40
codegen_flags: <defaults>
</compile_context>

<pallas_src>
from dataclasses import dataclass, field
from functools import partial
from typing import Sequence

import jax
import jax.numpy as jnp
from jax.experimental import pallas as pl
from jax.experimental.pallas import tpu as pltpu


def _round_up(x: int, m: int) -> int:
    return ((x + m - 1) // m) * m


def _pick_tile(dim: int, pref: int, align: int) -> int:
    """Smallest align-multiple >= dim if it fits under `pref`; otherwise the
    align-multiple tile <= pref that minimizes padding waste (ties -> larger)."""
    aligned = _round_up(dim, align)
    if aligned <= pref:
        return aligned
    best_t, best_waste = align, None
    t = align
    while t <= pref:
        waste = _round_up(dim, t) - dim
        if best_waste is None or waste < best_waste or (waste == best_waste and t > best_t):
            best_t, best_waste = t, waste
        t += align
    return best_t


# ----------------------------------------------------------------------------
# Pallas kernels: y = relu(x @ W^T + b), W kept in native nn.Linear (out, in)
# layout; contraction on the last dim of both operands.
# ----------------------------------------------------------------------------
_DN = (((1,), (1,)), ((), ()))  # contract x dim1 with w dim1 -> (tm, tn)


def _linear_relu_kernel_1k(x_ref, w_ref, b_ref, o_ref):
    # Single K step: no scratch accumulator, no predicated init/finalize.
    acc = jax.lax.dot_general(x_ref[...], w_ref[...], dimension_numbers=_DN,
                              preferred_element_type=jnp.float32)
    o_ref[...] = jnp.maximum(acc + b_ref[...], 0.0).astype(o_ref.dtype)


def _linear_relu_kernel(x_ref, w_ref, b_ref, o_ref, acc_ref):
    k = pl.program_id(2)

    @pl.when(k == 0)
    def _init():
        acc_ref[...] = jnp.zeros_like(acc_ref)

    acc_ref[...] += jax.lax.dot_general(x_ref[...], w_ref[...],
                                        dimension_numbers=_DN,
                                        preferred_element_type=jnp.float32)

    @pl.when(k == pl.num_programs(2) - 1)
    def _finalize():
        o_ref[...] = jnp.maximum(acc_ref[...] + b_ref[...], 0.0).astype(o_ref.dtype)


# ----------------------------------------------------------------------------
# One-time (per parameter update) weight/bias preparation: pad + cast, no
# transpose.  Keeps per-forward HBM traffic down to x + the padded weight.
# ----------------------------------------------------------------------------
def prepare_linear_params(weight, bias, *, tn: int = 512, tk: int = 1024,
                          compute_dtype=jnp.bfloat16):
    N, K = weight.shape                       # nn.Linear layout: (out, in)
    tn_ = _pick_tile(N, tn, 128)
    tk_ = _pick_tile(K, tk, 128)
    Np, Kp = _round_up(N, tn_), _round_up(K, tk_)
    wp = weight.astype(compute_dtype)
    if (Np, Kp) != (N, K):
        wp = jnp.pad(wp, ((0, Np - N), (0, Kp - K)))
    bp = bias.astype(jnp.float32).reshape(1, -1)
    if Np != N:
        bp = jnp.pad(bp, ((0, 0), (0, Np - N)))
    return wp, bp, (tn_, tk_), int(N)


def linear_relu_pallas(x, w_padded, b_padded, *, n_out: int, tile_nk,
                       tm: int = 512, compute_dtype=jnp.bfloat16):
    """x:(M,K) (any float), w_padded:(Np,Kp) compute_dtype, b_padded:(1,Np) f32.
    Returns relu(x @ W^T + b) in x.dtype, shape (M, n_out)."""
    M, K = x.shape
    Np, Kp = w_padded.shape
    tn_, tk_ = tile_nk
    assert Np % tn_ == 0 and Kp % tk_ == 0 and K <= Kp
    out_dtype = x.dtype

    tm_ = min(tm, _round_up(M, 8))
    # v7x has 2 TensorCores: make sure the (i, j) "parallel" grid has >= 2
    # points when it cheaply can (splitting M only costs sublane padding).
    if (_round_up(M, tm_) // tm_) * (Np // tn_) == 1 and M > 8:
        tm_ = _round_up(-(-M // 2), 8)
    Mp = _round_up(M, tm_)

    xp = x.astype(compute_dtype)
    if (Mp, Kp) != (M, K):
        xp = jnp.pad(xp, ((0, Mp - M), (0, Kp - K)))

    gm, gn, gk = Mp // tm_, Np // tn_, Kp // tk_
    grid = (gm, gn, gk)

    cbytes = jnp.dtype(compute_dtype).itemsize
    obytes = jnp.dtype(out_dtype).itemsize
    cost = pl.CostEstimate(
        flops=2 * Mp * Np * Kp,
        transcendentals=0,
        bytes_accessed=(cbytes * Mp * Kp * gn      # x re-read per N block
                        + cbytes * Kp * Np * gm    # W re-read per M block
                        + 4 * Np * gm              # bias
                        + obytes * Mp * Np),       # output
    )

    # Double-buffered VMEM footprint; budget against v7x's 64 MiB physical
    # VMEM (cap 48 MiB), floor at 32 MiB (v5e default scoped limit is 16 MiB).
    footprint = (2 * (tm_ * tk_ + tn_ * tk_) * cbytes
                 + 2 * tm_ * tn_ * obytes
                 + 2 * tn_ * 4
                 + (tm_ * tn_ * 4 if gk > 1 else 0))
    vmem_limit = int(min(48 << 20, max(32 << 20, 2 * footprint)))

    if gk == 1:
        kernel, scratch = _linear_relu_kernel_1k, []
    else:
        kernel, scratch = _linear_relu_kernel, [pltpu.VMEM((tm_, tn_), jnp.float32)]

    out = pl.pallas_call(
        kernel,
        out_shape=jax.ShapeDtypeStruct((Mp, Np), out_dtype),
        grid_spec=pltpu.PrefetchScalarGridSpec(
            num_scalar_prefetch=0,
            grid=grid,
            in_specs=[
                pl.BlockSpec((tm_, tk_), lambda i, j, k: (i, k)),
                pl.BlockSpec((tn_, tk_), lambda i, j, k: (j, k)),  # native (out,in)
                pl.BlockSpec((1, tn_), lambda i, j, k: (0, j)),
            ],
            out_specs=pl.BlockSpec((tm_, tn_), lambda i, j, k: (i, j)),
            scratch_shapes=scratch,
        ),
        compiler_params=pltpu.CompilerParams(
            dimension_semantics=("parallel", "parallel", "arbitrary"),
            vmem_limit_bytes=vmem_limit,
        ),
        cost_estimate=cost,
    )(xp, w_padded, b_padded)

    if (Mp, Np) != (M, n_out):
        out = out[:M, :n_out]
    return out


# ----------------------------------------------------------------------------
# Minimal stand-ins for the distributed-schema types used by SPMD.__init__
# ----------------------------------------------------------------------------
class Placement:
    pass


class Replicate(Placement):
    def __eq__(self, other):
        return isinstance(other, Replicate)

    def __repr__(self):
        return "Replicate()"


@dataclass
class Schema:
    mesh: object = None
    placements: Sequence[Placement] = field(default_factory=lambda: [Replicate()])


# ----------------------------------------------------------------------------
# The wrapped (non-distributed) module: Linear(Din -> Dout) + ReLU
# ----------------------------------------------------------------------------
class InnerLinearReLU:
    def __init__(self, in_features: int, out_features: int, key: jax.Array):
        kw, kb = jax.random.split(key)
        bound = 1.0 / float(jnp.sqrt(jnp.float32(in_features)))
        # PyTorch nn.Linear weight layout is (out, in); keep that convention.
        self.weight = jax.random.uniform(
            kw, (out_features, in_features), jnp.float32, -bound, bound)
        self.bias = jax.random.uniform(
            kb, (out_features,), jnp.float32, -bound, bound)

    def parameters(self):
        return [self.weight, self.bias]


# ----------------------------------------------------------------------------
# SPMD wrapper: mirrors torch.distributed._spmd.api.SPMD semantics.
# ----------------------------------------------------------------------------
class SPMD:
    def __init__(self, module: InnerLinearReLU, schema: Schema,
                 input_schemas: Sequence[Placement] = tuple(),
                 compute_dtype=jnp.bfloat16) -> None:
        assert schema.placements == [Replicate()], (
            "SPMD only support Replicate() parameters for now")
        # dist.broadcast(p, src=0): identity on a single device / replicated
        # parameters; modeled explicitly.
        for _p in module.parameters():
            pass
        self._param_schema = schema
        self._input_schemas = input_schemas
        self._compiled_m = None
        self._orig_module = module
        self._compute_dtype = compute_dtype
        self._prepared = None
        self._prepared_key = None

    def _prepare_params(self):
        w, b = self._orig_module.weight, self._orig_module.bias
        key = (id(w), id(b))
        if self._prepared_key != key:
            # One HBM pass to pad + cast the weight/bias; cached until the
            # parameter arrays are replaced (e.g. by an optimizer update).
            self._prepared = prepare_linear_params(
                w, b, compute_dtype=self._compute_dtype)
            self._prepared_key = key
        return self._prepared

    def _distribute(self):
        compute_dtype = self._compute_dtype

        # `distribute(...)` produces a compiled module whose forward matches
        # the original module's forward.  Parameters are jit arguments (not
        # closure constants) so updating them never silently re-bakes.
        @partial(jax.jit, static_argnames=("n_out", "tile_nk"))
        def compiled_forward(x, w_padded, b_padded, *, n_out, tile_nk):
            return linear_relu_pallas(x, w_padded, b_padded, n_out=n_out,
                                      tile_nk=tile_nk,
                                      compute_dtype=compute_dtype)

        return compiled_forward

    def forward(self, x):
        if self._compiled_m is None:
            self._compiled_m = self._distribute()
        assert self._compiled_m is not None
        wp, bp, tile_nk, n_out = self._prepare_params()
        return self._compiled_m(x, wp, bp, n_out=n_out, tile_nk=tile_nk)

    __call__ = forward


# ----------------------------------------------------------------------------
if __name__ == "__main__":
    key = jax.random.PRNGKey(0)
    k_param, k_x, k_param2, k_x2 = jax.random.split(key, 4)

    # --- Test 1: small shapes consistent with the SPMD unit-test module -----
    # bf16 MXU path (default); compared against the f32 reference with a
    # tolerance matching bf16 input-rounding error.
    B, DIN, DOUT = 8, 32, 32
    inner = InnerLinearReLU(DIN, DOUT, k_param)
    spmd = SPMD(inner, Schema(placements=[Replicate()]),
                input_schemas=(Replicate(),))

    x = jax.random.normal(k_x, (B, DIN), jnp.float32)
    y = jax.block_until_ready(spmd(x))

    y_ref = jnp.maximum(
        jnp.dot(x, inner.weight.T, precision=jax.lax.Precision.HIGHEST) + inner.bias,
        0.0)
    assert y.shape == (B, DOUT)
    assert jnp.allclose(y, y_ref, atol=5e-2, rtol=5e-2)

    # --- Test 2: non-aligned shapes exercising adaptive padding + M split ---
    B2, DIN2, DOUT2 = 40, 600, 260
    inner2 = InnerLinearReLU(DIN2, DOUT2, k_param2)
    spmd2 = SPMD(inner2, Schema(placements=[Replicate()]),
                 input_schemas=(Replicate(),))

    x2 = jax.random.normal(k_x2, (B2, DIN2), jnp.float32)
    y2 = jax.block_until_ready(spmd2(x2))

    y2_ref = jnp.maximum(
        jnp.dot(x2, inner2.weight.T, precision=jax.lax.Precision.HIGHEST) + inner2.bias,
        0.0)
    assert y2.shape == (B2, DOUT2)
    assert jnp.allclose(y2, y2_ref, atol=5e-2, rtol=5e-2)

    # --- Test 3: float32 reference/fallback path, tight tolerance -----------
    spmd2_f32 = SPMD(inner2, Schema(placements=[Replicate()]),
                     input_schemas=(Replicate(),), compute_dtype=jnp.float32)
    y2_f32 = jax.block_until_ready(spmd2_f32(x2))
    assert y2_f32.shape == (B2, DOUT2)
    assert jnp.allclose(y2_f32, y2_ref, atol=1e-4, rtol=1e-4)

    print("KERNEL_OK")
</pallas_src>

<mosaic_0001>
module attributes {stable_mosaic.version = 11 : i64} {
  func.func @_linear_relu_kernel_1k(%arg0: i32, %arg1: i32, %arg2: i32, %arg3: memref<8x128xbf16, #tpu.memory_space<vmem>>, %arg4: memref<128x128xbf16, #tpu.memory_space<vmem>>, %arg5: memref<1x128xf32, #tpu.memory_space<vmem>>, %arg6: memref<8x128xf32, #tpu.memory_space<vmem>>) attributes {dimension_semantics = [#tpu.dimension_semantics<parallel>, #tpu.dimension_semantics<parallel>, #tpu.dimension_semantics<arbitrary>], iteration_bounds = array<i64: 1, 1, 1>, scalar_prefetch = 0 : i64, scratch_operands = 0 : i64, tpu.core_type = #tpu.core_type<tc>, window_params = [{transform_indices = @transform_0, window_bounds = array<i64: 8, 128>}, {transform_indices = @transform_1, window_bounds = array<i64: 128, 128>}, {transform_indices = @transform_2, window_bounds = array<i64: 1, 128>}, {transform_indices = @transform_3, window_bounds = array<i64: 8, 128>}]} {
    %c0 = arith.constant 0 : index
    %c0_0 = arith.constant 0 : index
    %0 = vector.load %arg3[%c0, %c0_0] : memref<8x128xbf16, #tpu.memory_space<vmem>>, vector<8x128xbf16>
    %c0_1 = arith.constant 0 : index
    %c0_2 = arith.constant 0 : index
    %1 = vector.load %arg4[%c0_1, %c0_2] : memref<128x128xbf16, #tpu.memory_space<vmem>>, vector<128x128xbf16>
    %cst = arith.constant dense<0.000000e+00> : vector<8x128xf32>
    %2 = tpu.matmul %0, %1, %cst {dimension_numbers = #tpu.dot_dimension_numbers<[1], [1], [0], [0], [0, 0, 1, 0], [], []>} : vector<8x128xbf16>, vector<128x128xbf16>, vector<8x128xf32> -> vector<8x128xf32>
    %c0_3 = arith.constant 0 : index
    %c0_4 = arith.constant 0 : index
    %3 = vector.load %arg5[%c0_3, %c0_4] : memref<1x128xf32, #tpu.memory_space<vmem>>, vector<1x128xf32>
    %4 = vector.broadcast %3 : vector<1x128xf32> to vector<8x128xf32>
    %5 = arith.addf %2, %4 : vector<8x128xf32>
    %cst_5 = arith.constant 0.000000e+00 : f32
    %6 = vector.broadcast %cst_5 : f32 to vector<8x128xf32>
    %7 = arith.maximumf %5, %6 : vector<8x128xf32>
    %c0_6 = arith.constant 0 : index
    %c0_7 = arith.constant 0 : index
    %8 = vector.load %arg6[%c0_6, %c0_7] : memref<8x128xf32, #tpu.memory_space<vmem>>, vector<8x128xf32>
    tpu.vector_store %arg6[%c0_6, %c0_7], %7 {strides = array<i32>} : memref<8x128xf32, #tpu.memory_space<vmem>>, vector<8x128xf32>,
    return
  }
  func.func @transform_0(%arg0: i32, %arg1: i32, %arg2: i32) -> (i32, i32) {
    %c0_i32 = arith.constant 0 : i32
    return %arg0, %arg2 : i32, i32
  }
  func.func @transform_1(%arg0: i32, %arg1: i32, %arg2: i32) -> (i32, i32) {
    %c0_i32 = arith.constant 0 : i32
    return %arg1, %arg2 : i32, i32
  }
  func.func @transform_2(%arg0: i32, %arg1: i32, %arg2: i32) -> (i32, i32) {
    %c0_i32 = arith.constant 0 : i32
    %c0_i32_0 = arith.constant 0 : i32
    return %c0_i32, %arg1 : i32, i32
  }
  func.func @transform_3(%arg0: i32, %arg1: i32, %arg2: i32) -> (i32, i32) {
    %c0_i32 = arith.constant 0 : i32
    return %arg0, %arg1 : i32, i32
  }
}

</mosaic_0001>

<llo_original>
// kernel: compiled_forward.1
$region0: #{compiled_forward.1}
  #allocation0 [shape = 'u32[]', space=smem, size = 0x4, offset = 0x4, fixed_abs, tag = 'smem constant byte address 0x4 - core index']
  #allocation1 [shape = 'u32[144,128]{1,0:T(1,128)}', space=vmem, size = 0x12000, scoped, tag = 'internal scratch']
  %s0 = inlined_call_operand.vmem [shape: bf16[8,128], index: 0, kind: input, shape index: {}]
  %s1 = inlined_call_operand.hbm [shape: bf16[128,128], index: 1, kind: input, shape index: {}]
  %s2 = inlined_call_operand.vmem [shape: f32[1,128], index: 2, kind: input, shape index: {}]
  %s3 = inlined_call_operand.hbm [shape: f32[8,128], index: 3, kind: output, shape index: {}]
  %s4 = sld [smem:[#allocation0]]
  $region26: #{compiled_forward.1} parent=0
    _
  %s6 = ssub.s32 1, %s4
  %s7 = scalar_select 0, %s6, %s4
  $region1: #{compiled_forward.1} parent=0
    #allocation2 [shape = 'u8[32768]{0}', space=vmem, size = 0x8000, scoped, tag = 'input window, operand 1, single buffered']
    #allocation3 [shape = 's32[1]{0}', space=sflag, size = 0x4, scoped, tag = 'scoped memory for compiled_forward.1']
    #allocation4 [shape = 's32[1]{0}', space=sflag, size = 0x4, scoped, tag = 'scoped memory for compiled_forward.1']
    #allocation5 [shape = 'u8[4096]{0}', space=vmem, size = 0x1000, scoped, tag = 'output window, operand 0, single buffered']
    %8 = vsyncpa [#allocation3], 0
    %9 = vsyncpa [#allocation4], 0
    // Predicated region
    $region2: #{compiled_forward.1} parent=1 // pred_check
      _
    $region3: #{compiled_forward.1} parent=1 // pred_check_branch
      %11 = sbr.rel (0) target = $region5
    $region4: #{compiled_forward.1} parent=1 // pred_region
      _
    $region5: #{compiled_forward.1} parent=1 // pred_fallthru
      _
    // Predicated region
    $region6: #{compiled_forward.1} parent=1 // pred_check
      _
    $region7: #{compiled_forward.1} parent=1 // pred_check_branch
      %13 = sbr.rel (0) target = $region9
    $region8: #{compiled_forward.1} parent=1 // pred_region
      %s15 = ssub.s32 1024, 1024
      %16 = vsyncadd [#allocation3], %s15
      %s17 = sshll.u32 [#allocation2], 4
      %s18 = int_to_ptr.vmem [resolvable:$true] %s17
      %23 = dma.hbm_to_vmem [thread:$0]  %s1, 1024, %s18, [#allocation3], 64, 64, 4
    $region9: #{compiled_forward.1} parent=1 // pred_fallthru
      _
    // Predicated region
    $region10: #{compiled_forward.1} parent=1 // pred_check
      _
    $region11: #{compiled_forward.1} parent=1 // pred_check_branch
      %25 = sbr.rel (0) target = $region13
    $region12: #{compiled_forward.1} parent=1 // pred_region
      _
    $region13: #{compiled_forward.1} parent=1 // pred_fallthru
      _
    // Predicated region
    $region14: #{compiled_forward.1} parent=1 // pred_check
      _
    $region15: #{compiled_forward.1} parent=1 // pred_check_branch
      %27 = sbr.rel (0) target = $region17
    $region16: #{compiled_forward.1} parent=1 // pred_region
      %28 = dma.done [#allocation3], 1024
    $region17: #{compiled_forward.1} parent=1 // pred_fallthru
      _
    %v30 = vld [vmem:[%s0] sm:$0xf]
    %v31 = vld [vmem:[#allocation2] sm:$0xf]
    %v32 = vld [vmem:[#allocation2 + $0x4] sm:$0xf]
    %v33 = vld [vmem:[#allocation2 + $0x8] sm:$0xf]
    %v34 = vld [vmem:[#allocation2 + $0xc] sm:$0xf]
    %v35 = vld [vmem:[#allocation2 + $0x10] sm:$0xf]
    %v36 = vld [vmem:[#allocation2 + $0x14] sm:$0xf]
    %v37 = vld [vmem:[#allocation2 + $0x18] sm:$0xf]
    %v38 = vld [vmem:[#allocation2 + $0x1c] sm:$0xf]
    %v39 = vld [vmem:[#allocation2 + $0x20] sm:$0xf]
    %v40 = vld [vmem:[#allocation2 + $0x24] sm:$0xf]
    %v41 = vld [vmem:[#allocation2 + $0x28] sm:$0xf]
    %v42 = vld [vmem:[#allocation2 + $0x2c] sm:$0xf]
    %v43 = vld [vmem:[#allocation2 + $0x30] sm:$0xf]
    %v44 = vld [vmem:[#allocation2 + $0x34] sm:$0xf]
    %v45 = vld [vmem:[#allocation2 + $0x38] sm:$0xf]
    %v46 = vld [vmem:[#allocation2 + $0x3c] sm:$0xf]
    %v47 = vld [vmem:[%s2] sm:$0x1]
    %v49 = vlaneseq
    %v50 = vshrl.u32 %v49, 7
    %v51 = vsub.s32 0, %v50
    %v52 = vrot.slane %v47, %v51
    %v70 = vunpack.c.l.b16 %v31
    %v71 = vunpack.c.l.b16 %v32
    %v72 = vunpack.c.l.b16 %v33
    %v73 = vunpack.c.l.b16 %v34
    %v74 = vunpack.c.l.b16 %v35
    %v75 = vunpack.c.l.b16 %v36
    %v76 = vunpack.c.l.b16 %v37
    %v77 = vunpack.c.l.b16 %v38
    %v78 = vunpack.c.l.b16 %v39
    %v79 = vunpack.c.l.b16 %v40
    %v80 = vunpack.c.l.b16 %v41
    %v81 = vunpack.c.l.b16 %v42
    %v82 = vunpack.c.l.b16 %v43
    %v83 = vunpack.c.l.b16 %v44
    %v84 = vunpack.c.l.b16 %v45
    %v85 = vunpack.c.l.b16 %v46
    %v86 = vpack.c.b16 %v71, %v70
    %v87 = vpack.c.b16 %v73, %v72
    %v88 = vpack.c.b16 %v75, %v74
    %v89 = vpack.c.b16 %v77, %v76
    %v90 = vpack.c.b16 %v79, %v78
    %v91 = vpack.c.b16 %v81, %v80
    %v92 = vpack.c.b16 %v83, %v82
    %v93 = vpack.c.b16 %v85, %v84
    %102 = vmatprep.subr.bf16.mxu0 0
    %103 = vmatpush1.bf16.xpose.msra.mxu0 %v86
    %104 = vmatprep.subr.bf16.mxu0 0
    %105 = vmatpush1.bf16.xpose.msra.mxu0 %v87
    %106 = vmatprep.subr.bf16.mxu0 0
    %107 = vmatpush1.bf16.xpose.msra.mxu0 %v88
    %108 = vmatprep.subr.bf16.mxu0 0
    %109 = vmatpush1.bf16.xpose.msra.mxu0 %v89
    %110 = vmatprep.subr.bf16.mxu0 0
    %111 = vmatpush1.bf16.xpose.msra.mxu0 %v90
    %112 = vmatprep.subr.bf16.mxu0 0
    %113 = vmatpush1.bf16.xpose.msra.mxu0 %v91
    %114 = vmatprep.subr.bf16.mxu0 0
    %115 = vmatpush1.bf16.xpose.msra.mxu0 %v92
    %116 = vmatprep.subr.bf16.mxu0 0
    %117 = vmatpush1.bf16.xpose.msra.mxu0 %v93
    %118 = vmatprep.subr.bf16.mxu0 0
    %119 = vmatpush1.bf16.xpose.msra.mxu0 0
    %120 = vmatprep.subr.bf16.mxu0 0
    %121 = vmatpush1.bf16.xpose.msra.mxu0 0
    %122 = vmatprep.subr.bf16.mxu0 0
    %123 = vmatpush1.bf16.xpose.msra.mxu0 0
    %124 = vmatprep.subr.bf16.mxu0 0
    %125 = vmatpush1.bf16.xpose.msra.mxu0 0
    %126 = vmatprep.subr.bf16.mxu0 0
    %127 = vmatpush1.bf16.xpose.msra.mxu0 0
    %128 = vmatprep.subr.bf16.mxu0 0
    %129 = vmatpush1.bf16.xpose.msra.mxu0 0
    %130 = vmatprep.subr.bf16.mxu0 0
    %131 = vmatpush1.bf16.xpose.msra.mxu0 0
    %132 = vmatprep.subr.bf16.mxu0 0
    %133 = vmatpush1.bf16.xpose.msra.mxu0 0
    %134 = vmatprep.mubr.bf16.mxu0 0
    %135 = vmatmul.mubr.bf16.gmra.mrb[0].mxu0 %v30
    %v136 = vpop.f32.mrb[0].mxu0
    %v137 = vadd.f32 %v52, %v136
    %v138 = vpop.f32.mrb[0].mxu0
    %v139 = vpop.f32.mrb[0].mxu0
    %v140 = vpop.f32.mrb[0].mxu0
    %141 = vdwg.mxu0
    %v142 = vmax.f32 %v137, 0.0
    %143 = vst [vmem:[#allocation5] sm:$0xff] %v142
    // Predicated region
    $region18: #{compiled_forward.1} parent=1 // pred_check
      _
    $region19: #{compiled_forward.1} parent=1 // pred_check_branch
      %145 = sbr.rel (0) target = $region21
    $region20: #{compiled_forward.1} parent=1 // pred_region
      %s147 = ssub.s32 128, 128
      %148 = vsyncadd [#allocation4], %s147
      %s150 = sshll.u32 [#allocation5], 4
      %s151 = int_to_ptr.vmem [resolvable:$true] %s150
      %153 = dma.vmem_to_hbm [thread:$0]  %s151, 128, %s3, [#allocation4]
    $region21: #{compiled_forward.1} parent=1 // pred_fallthru
      _
    // Predicated region
    $region22: #{compiled_forward.1} parent=1 // pred_check
      _
    $region23: #{compiled_forward.1} parent=1 // pred_check_branch
      %155 = sbr.rel (0) target = $region25
    $region24: #{compiled_forward.1} parent=1 // pred_region
      %156 = dma.done [#allocation4], 128
    $region25: #{compiled_forward.1} parent=1 // pred_fallthru
      _
    %157 = vsyncpa [#allocation3], 1
    %158 = vsyncpa [#allocation4], 1

</llo_original>
